<compile_context>
chip_gen: v6e
topology: v6e:2x2x1
jax: 0.10.0
libtpu: 0.0.40
codegen_flags: <defaults>
</compile_context>

<pallas_src>
import jax
import jax.numpy as jnp
from jax.experimental import pallas as pl
from jax.experimental.pallas import tpu as pltpu


def _glf_kernel(x_ref, w1t_ref, w2t_ref, gamma_ref, const_ref, wc_ref, o_ref):
    # x_ref:     (Bt, T, N)   VMEM   input tile (Bt batch rows)
    # w1t_ref:   (T, H)       VMEM   SE reduce weight, pre-transposed
    # w2t_ref:   (H, T)       VMEM   SE expand weight, pre-transposed
    # gamma_ref: (1, N)       VMEM   LayerNorm weight
    # const_ref: (1, F*N)     VMEM   folded constant: wc.sum(1) x beta + bc
    # wc_ref:    (F, T)       SMEM   Conv1d(k=1) weight (scalar reads)
    # o_ref:     (Bt, F*N)    VMEM   output tile (lane-dense 128-aligned slices)
    bt, t_dim, n_dim = x_ref.shape
    f_dim = const_ref.shape[1] // n_dim

    x = x_ref[...].astype(jnp.float32)                               # (Bt, T, N)

    # --- single pass over x: per-(b,t) mean and mean-of-squares -------------
    mean_x = jnp.mean(x, axis=-1)                                    # (Bt, T)
    mean_x2 = jnp.mean(x * x, axis=-1)                               # (Bt, T)
    var_x = mean_x2 - mean_x * mean_x                                # (Bt, T)

    # --- SE excitation: tiny dots routed to the (idle) MXU ------------------
    w1t = w1t_ref[...].astype(jnp.float32)                           # (T, H)
    w2t = w2t_ref[...].astype(jnp.float32)                           # (H, T)
    h = jnp.maximum(
        jnp.dot(mean_x, w1t, preferred_element_type=jnp.float32), 0.0)        # (Bt, H)
    s = jax.nn.sigmoid(
        jnp.dot(h, w2t, preferred_element_type=jnp.float32))                  # (Bt, T)

    # --- fold SE scale into the LayerNorm statistics -------------------------
    #   y = s*x  =>  mu_y = s*mu_x, var_y = s^2*var_x
    #   yhat = (y - mu_y) * rsqrt(var_y + eps) = a*x + off   (per (b,t) row)
    inv = jax.lax.rsqrt(s * s * var_x + 1e-5)                        # (Bt, T)
    a = s * inv                                                      # (Bt, T)
    off = -mean_x * a                                                # (Bt, T)

    gamma = gamma_ref[...].astype(jnp.float32)                       # (1, N)

    # --- Conv1d(k=1) over T; gamma post-conv; biases folded into const ------
    #   out_f = gamma * sum_t wc[f,t] * (a[:,t]*x[:,t,:] + off[:,t]) + const_f
    for fi in range(f_dim):
        acc = jnp.zeros((bt, n_dim), jnp.float32)
        dsum = jnp.zeros((bt, 1), jnp.float32)
        for ti in range(t_dim):
            w = wc_ref[fi, ti]                                       # SMEM scalar
            acc = acc + (w * a[:, ti:ti + 1]) * x[:, ti, :]
            dsum = dsum + w * off[:, ti:ti + 1]
        row = (acc + dsum) * gamma \
            + const_ref[:, fi * n_dim:(fi + 1) * n_dim].astype(jnp.float32)
        o_ref[:, fi * n_dim:(fi + 1) * n_dim] = row.astype(o_ref.dtype)


# ~2 MiB x-tile / ~0.5 MiB out-tile at (T=8, N=128, F=2): well inside the
# scoped-VMEM budget of every TPU generation (incl. v7x) with double-buffering.
_BATCH_TILE_TARGET = 512


def global_local_fusion(x, w1, w2, gamma, beta, wc, bc, num_frame):
    B, T, P, D = x.shape
    N = P * D
    F_out = num_frame
    H = w1.shape[0]                      # channel // reduction
    bt = min(B, _BATCH_TILE_TARGET)      # large tile; ragged last block is safe
    grid_b = pl.cdiv(B, bt)

    xf = x.reshape(B, T, N)
    w1t = jnp.transpose(w1)              # (T, H)
    w2t = jnp.transpose(w2)              # (H, T)
    gamma2 = gamma.reshape(1, N)
    # Fold LayerNorm bias and conv bias (gamma commutes with the T-contraction):
    #   const[f, :] = wc[f, :].sum() * beta + bc[f]
    const = (wc.sum(axis=1)[:, None] * beta[None, :] + bc[:, None]).reshape(1, F_out * N)

    out = pl.pallas_call(
        _glf_kernel,
        out_shape=jax.ShapeDtypeStruct((B, F_out * N), x.dtype),
        grid_spec=pltpu.PrefetchScalarGridSpec(
            num_scalar_prefetch=0,
            grid=(grid_b,),
            in_specs=[
                pl.BlockSpec((bt, T, N), lambda b: (b, 0, 0)),
                pl.BlockSpec((T, H), lambda b: (0, 0)),
                pl.BlockSpec((H, T), lambda b: (0, 0)),
                pl.BlockSpec((1, N), lambda b: (0, 0)),
                pl.BlockSpec((1, F_out * N), lambda b: (0, 0)),
                pl.BlockSpec(memory_space=pltpu.MemorySpace.SMEM),   # wc scalars
            ],
            out_specs=pl.BlockSpec((bt, F_out * N), lambda b: (b, 0)),
        ),
        compiler_params=pltpu.CompilerParams(
            dimension_semantics=("parallel",),
            vmem_limit_bytes=32 << 20,
        ),
    )(xf, w1t, w2t, gamma2, const, wc)
    return out.reshape(B, F_out, P, D)


def _reference(x, w1, w2, gamma, beta, wc, bc):
    """Pure-JAX reference matching the PyTorch forward (un-folded math)."""
    B, T, P, D = x.shape
    pooled = x.mean(axis=(2, 3))                                     # (B, T)
    h = jax.nn.relu(pooled @ w1.T)
    s = jax.nn.sigmoid(h @ w2.T)                                     # (B, T)
    y = x * s[:, :, None, None]
    y = y.reshape(B, T, P * D)
    mu = y.mean(-1, keepdims=True)
    var = ((y - mu) ** 2).mean(-1, keepdims=True)
    yn = (y - mu) / jnp.sqrt(var + 1e-5) * gamma + beta
    out = jnp.einsum('ft,btn->bfn', wc, yn) + bc[None, :, None]
    return out.reshape(B, wc.shape[0], P, D)


if __name__ == "__main__":
    # module hyper-params (small, consistent with the forward semantics)
    num_frame = 2
    num_joints = 4          # P
    embed_dim_ratio = 32    # D
    T = 4 * num_frame       # 8  (== channel)
    channel = T
    reducion = 4            # channel // reducion = 2
    hidden = channel // reducion
    B = 2
    N = num_joints * embed_dim_ratio  # 128

    key = jax.random.PRNGKey(0)
    kx, k1, k2, kg, kb, kw, kc = jax.random.split(key, 7)

    x = jax.random.normal(kx, (B, T, num_joints, embed_dim_ratio), jnp.float32)

    # deterministic synthetic parameters (shapes from __init__)
    w1 = jax.random.normal(k1, (hidden, channel), jnp.float32) * 0.2   # Linear(channel, channel//r, bias=False)
    w2 = jax.random.normal(k2, (channel, hidden), jnp.float32) * 0.2   # Linear(channel//r, channel, bias=False)
    gamma = 1.0 + 0.1 * jax.random.normal(kg, (N,), jnp.float32)       # LayerNorm weight
    beta = 0.1 * jax.random.normal(kb, (N,), jnp.float32)              # LayerNorm bias
    wc = jax.random.normal(kw, (num_frame, T), jnp.float32) * 0.2      # Conv1d weight (k=1), squeezed
    bc = 0.1 * jax.random.normal(kc, (num_frame,), jnp.float32)        # Conv1d bias

    out = global_local_fusion(x, w1, w2, gamma, beta, wc, bc, num_frame)
    out = jax.block_until_ready(out)

    ref = _reference(x, w1, w2, gamma, beta, wc, bc)
    assert out.shape == (B, num_frame, num_joints, embed_dim_ratio), out.shape
    assert jnp.allclose(out, ref, atol=1e-4, rtol=1e-4), "mismatch vs reference"

    print("KERNEL_OK")
</pallas_src>

<mosaic_0001>
module attributes {stable_mosaic.version = 11 : i64} {
  func.func @_glf_kernel(%arg0: i32, %arg1: memref<2x8x128xf32, #tpu.memory_space<vmem>>, %arg2: memref<8x2xf32, #tpu.memory_space<vmem>>, %arg3: memref<2x8xf32, #tpu.memory_space<vmem>>, %arg4: memref<1x128xf32, #tpu.memory_space<vmem>>, %arg5: memref<1x256xf32, #tpu.memory_space<vmem>>, %arg6: memref<2x8xf32, #tpu.memory_space<smem>>, %arg7: memref<2x256xf32, #tpu.memory_space<vmem>>) attributes {dimension_semantics = [#tpu.dimension_semantics<parallel>], iteration_bounds = array<i64: 1>, scalar_prefetch = 0 : i64, scratch_operands = 0 : i64, tpu.core_type = #tpu.core_type<tc>, window_params = [{transform_indices = @transform_0, window_bounds = array<i64: 2, 8, 128>}, {pipeline_mode = #tpu.pipeline_mode<synchronous>, transform_indices = @transform_1, window_bounds = array<i64: 8, 2>}, {pipeline_mode = #tpu.pipeline_mode<synchronous>, transform_indices = @transform_2, window_bounds = array<i64: 2, 8>}, {pipeline_mode = #tpu.pipeline_mode<synchronous>, transform_indices = @transform_3, window_bounds = array<i64: 1, 128>}, {pipeline_mode = #tpu.pipeline_mode<synchronous>, transform_indices = @transform_4, window_bounds = array<i64: 1, 256>}, {transform_indices = @transform_5, window_bounds = array<i64: 2, 8>}, {transform_indices = @transform_6, window_bounds = array<i64: 2, 256>}]} {
    %c0 = arith.constant 0 : index
    %c0_0 = arith.constant 0 : index
    %c0_1 = arith.constant 0 : index
    %0 = vector.load %arg1[%c0, %c0_0, %c0_1] : memref<2x8x128xf32, #tpu.memory_space<vmem>>, vector<2x8x128xf32>
    %cst = arith.constant dense<0.000000e+00> : vector<2x8xf32>
    %1 = vector.multi_reduction <add>, %0, %cst [2] : vector<2x8x128xf32> to vector<2x8xf32>
    %cst_2 = arith.constant 1.280000e+02 : f32
    %2 = vector.broadcast %cst_2 : f32 to vector<2x8xf32>
    %3 = arith.divf %1, %2 : vector<2x8xf32>
    %4 = arith.mulf %0, %0 : vector<2x8x128xf32>
    %cst_3 = arith.constant dense<0.000000e+00> : vector<2x8xf32>
    %5 = vector.multi_reduction <add>, %4, %cst_3 [2] : vector<2x8x128xf32> to vector<2x8xf32>
    %cst_4 = arith.constant 1.280000e+02 : f32
    %6 = vector.broadcast %cst_4 : f32 to vector<2x8xf32>
    %7 = arith.divf %5, %6 : vector<2x8xf32>
    %8 = arith.mulf %3, %3 : vector<2x8xf32>
    %9 = arith.subf %7, %8 : vector<2x8xf32>
    %c0_5 = arith.constant 0 : index
    %c0_6 = arith.constant 0 : index
    %10 = vector.load %arg2[%c0_5, %c0_6] : memref<8x2xf32, #tpu.memory_space<vmem>>, vector<8x2xf32>
    %c0_7 = arith.constant 0 : index
    %c0_8 = arith.constant 0 : index
    %11 = vector.load %arg3[%c0_7, %c0_8] : memref<2x8xf32, #tpu.memory_space<vmem>>, vector<2x8xf32>
    %cst_9 = arith.constant dense<0.000000e+00> : vector<2x2xf32>
    %12 = tpu.matmul %3, %10, %cst_9 {dimension_numbers = #tpu.dot_dimension_numbers<[1], [0], [0], [1], [0, 0, 1, 1], [], []>} : vector<2x8xf32>, vector<8x2xf32>, vector<2x2xf32> -> vector<2x2xf32>
    %cst_10 = arith.constant 0.000000e+00 : f32
    %13 = vector.broadcast %cst_10 : f32 to vector<2x2xf32>
    %14 = arith.maximumf %12, %13 : vector<2x2xf32>
    %cst_11 = arith.constant dense<0.000000e+00> : vector<2x8xf32>
    %15 = tpu.matmul %14, %11, %cst_11 {dimension_numbers = #tpu.dot_dimension_numbers<[1], [0], [0], [1], [0, 0, 1, 1], [], []>} : vector<2x2xf32>, vector<2x8xf32>, vector<2x8xf32> -> vector<2x8xf32>
    %16 = arith.negf %15 : vector<2x8xf32>
    %17 = math.exp %16 : vector<2x8xf32>
    %cst_12 = arith.constant 1.000000e+00 : f32
    %18 = vector.broadcast %cst_12 : f32 to vector<2x8xf32>
    %19 = arith.addf %18, %17 : vector<2x8xf32>
    %20 = arith.divf %18, %19 : vector<2x8xf32>
    %21 = arith.mulf %20, %20 : vector<2x8xf32>
    %22 = arith.mulf %21, %9 : vector<2x8xf32>
    %cst_13 = arith.constant 9.99999974E-6 : f32
    %23 = vector.broadcast %cst_13 : f32 to vector<2x8xf32>
    %24 = arith.addf %22, %23 : vector<2x8xf32>
    %25 = math.rsqrt %24 : vector<2x8xf32>
    %26 = arith.mulf %20, %25 : vector<2x8xf32>
    %cst_14 = arith.constant 0.000000e+00 : f32
    %27 = vector.broadcast %cst_14 : f32 to vector<2x8xf32>
    %28 = arith.subf %27, %3 : vector<2x8xf32>
    %29 = arith.mulf %28, %26 : vector<2x8xf32>
    %c0_15 = arith.constant 0 : index
    %c0_16 = arith.constant 0 : index
    %30 = vector.load %arg4[%c0_15, %c0_16] : memref<1x128xf32, #tpu.memory_space<vmem>>, vector<1x128xf32>
    %cst_17 = arith.constant 0.000000e+00 : f32
    %31 = vector.broadcast %cst_17 : f32 to vector<2x128xf32>
    %cst_18 = arith.constant 0.000000e+00 : f32
    %32 = vector.broadcast %cst_18 : f32 to vector<2x1xf32>
    %c0_19 = arith.constant 0 : index
    %c0_20 = arith.constant 0 : index
    %33 = memref.load %arg6[%c0_19, %c0_20] : memref<2x8xf32, #tpu.memory_space<smem>>
    %34 = vector.extract_strided_slice %26 {offsets = [0, 0], sizes = [2, 1], strides = [1, 1]} : vector<2x8xf32> to vector<2x1xf32>
    %35 = vector.broadcast %33 : f32 to vector<2x1xf32>
    %36 = arith.mulf %35, %34 : vector<2x1xf32>
    %37 = vector.extract_strided_slice %0 {offsets = [0, 0, 0], sizes = [2, 1, 128], strides = [1, 1, 1]} : vector<2x8x128xf32> to vector<2x1x128xf32>
    %38 = vector.shape_cast %37 : vector<2x1x128xf32> to vector<2x128xf32>
    %39 = vector.broadcast %36 : vector<2x1xf32> to vector<2x128xf32>
    %40 = arith.mulf %39, %38 : vector<2x128xf32>
    %41 = arith.addf %31, %40 : vector<2x128xf32>
    %42 = vector.extract_strided_slice %29 {offsets = [0, 0], sizes = [2, 1], strides = [1, 1]} : vector<2x8xf32> to vector<2x1xf32>
    %43 = vector.broadcast %33 : f32 to vector<2x1xf32>
    %44 = arith.mulf %43, %42 : vector<2x1xf32>
    %45 = arith.addf %32, %44 : vector<2x1xf32>
    %c0_21 = arith.constant 0 : index
    %c1 = arith.constant 1 : index
    %46 = memref.load %arg6[%c0_21, %c1] : memref<2x8xf32, #tpu.memory_space<smem>>
    %47 = vector.extract_strided_slice %26 {offsets = [0, 1], sizes = [2, 1], strides = [1, 1]} : vector<2x8xf32> to vector<2x1xf32>
    %48 = vector.broadcast %46 : f32 to vector<2x1xf32>
    %49 = arith.mulf %48, %47 : vector<2x1xf32>
    %50 = vector.extract_strided_slice %0 {offsets = [0, 1, 0], sizes = [2, 1, 128], strides = [1, 1, 1]} : vector<2x8x128xf32> to vector<2x1x128xf32>
    %51 = vector.shape_cast %50 : vector<2x1x128xf32> to vector<2x128xf32>
    %52 = vector.broadcast %49 : vector<2x1xf32> to vector<2x128xf32>
    %53 = arith.mulf %52, %51 : vector<2x128xf32>
    %54 = arith.addf %41, %53 : vector<2x128xf32>
    %55 = vector.extract_strided_slice %29 {offsets = [0, 1], sizes = [2, 1], strides = [1, 1]} : vector<2x8xf32> to vector<2x1xf32>
    %56 = vector.broadcast %46 : f32 to vector<2x1xf32>
    %57 = arith.mulf %56, %55 : vector<2x1xf32>
    %58 = arith.addf %45, %57 : vector<2x1xf32>
    %c0_22 = arith.constant 0 : index
    %c2 = arith.constant 2 : index
    %59 = memref.load %arg6[%c0_22, %c2] : memref<2x8xf32, #tpu.memory_space<smem>>
    %60 = vector.extract_strided_slice %26 {offsets = [0, 2], sizes = [2, 1], strides = [1, 1]} : vector<2x8xf32> to vector<2x1xf32>
    %61 = vector.broadcast %59 : f32 to vector<2x1xf32>
    %62 = arith.mulf %61, %60 : vector<2x1xf32>
    %63 = vector.extract_strided_slice %0 {offsets = [0, 2, 0], sizes = [2, 1, 128], strides = [1, 1, 1]} : vector<2x8x128xf32> to vector<2x1x128xf32>
    %64 = vector.shape_cast %63 : vector<2x1x128xf32> to vector<2x128xf32>
    %65 = vector.broadcast %62 : vector<2x1xf32> to vector<2x128xf32>
    %66 = arith.mulf %65, %64 : vector<2x128xf32>
    %67 = arith.addf %54, %66 : vector<2x128xf32>
    %68 = vector.extract_strided_slice %29 {offsets = [0, 2], sizes = [2, 1], strides = [1, 1]} : vector<2x8xf32> to vector<2x1xf32>
    %69 = vector.broadcast %59 : f32 to vector<2x1xf32>
    %70 = arith.mulf %69, %68 : vector<2x1xf32>
    %71 = arith.addf %58, %70 : vector<2x1xf32>
    %c0_23 = arith.constant 0 : index
    %c3 = arith.constant 3 : index
    %72 = memref.load %arg6[%c0_23, %c3] : memref<2x8xf32, #tpu.memory_space<smem>>
    %73 = vector.extract_strided_slice %26 {offsets = [0, 3], sizes = [2, 1], strides = [1, 1]} : vector<2x8xf32> to vector<2x1xf32>
    %74 = vector.broadcast %72 : f32 to vector<2x1xf32>
    %75 = arith.mulf %74, %73 : vector<2x1xf32>
    %76 = vector.extract_strided_slice %0 {offsets = [0, 3, 0], sizes = [2, 1, 128], strides = [1, 1, 1]} : vector<2x8x128xf32> to vector<2x1x128xf32>
    %77 = vector.shape_cast %76 : vector<2x1x128xf32> to vector<2x128xf32>
    %78 = vector.broadcast %75 : vector<2x1xf32> to vector<2x128xf32>
    %79 = arith.mulf %78, %77 : vector<2x128xf32>
    %80 = arith.addf %67, %79 : vector<2x128xf32>
    %81 = vector.extract_strided_slice %29 {offsets = [0, 3], sizes = [2, 1], strides = [1, 1]} : vector<2x8xf32> to vector<2x1xf32>
    %82 = vector.broadcast %72 : f32 to vector<2x1xf32>
    %83 = arith.mulf %82, %81 : vector<2x1xf32>
    %84 = arith.addf %71, %83 : vector<2x1xf32>
    %c0_24 = arith.constant 0 : index
    %c4 = arith.constant 4 : index
    %85 = memref.load %arg6[%c0_24, %c4] : memref<2x8xf32, #tpu.memory_space<smem>>
    %86 = vector.extract_strided_slice %26 {offsets = [0, 4], sizes = [2, 1], strides = [1, 1]} : vector<2x8xf32> to vector<2x1xf32>
    %87 = vector.broadcast %85 : f32 to vector<2x1xf32>
    %88 = arith.mulf %87, %86 : vector<2x1xf32>
    %89 = vector.extract_strided_slice %0 {offsets = [0, 4, 0], sizes = [2, 1, 128], strides = [1, 1, 1]} : vector<2x8x128xf32> to vector<2x1x128xf32>
    %90 = vector.shape_cast %89 : vector<2x1x128xf32> to vector<2x128xf32>
    %91 = vector.broadcast %88 : vector<2x1xf32> to vector<2x128xf32>
    %92 = arith.mulf %91, %90 : vector<2x128xf32>
    %93 = arith.addf %80, %92 : vector<2x128xf32>
    %94 = vector.extract_strided_slice %29 {offsets = [0, 4], sizes = [2, 1], strides = [1, 1]} : vector<2x8xf32> to vector<2x1xf32>
    %95 = vector.broadcast %85 : f32 to vector<2x1xf32>
    %96 = arith.mulf %95, %94 : vector<2x1xf32>
    %97 = arith.addf %84, %96 : vector<2x1xf32>
    %c0_25 = arith.constant 0 : index
    %c5 = arith.constant 5 : index
    %98 = memref.load %arg6[%c0_25, %c5] : memref<2x8xf32, #tpu.memory_space<smem>>
    %99 = vector.extract_strided_slice %26 {offsets = [0, 5], sizes = [2, 1], strides = [1, 1]} : vector<2x8xf32> to vector<2x1xf32>
    %100 = vector.broadcast %98 : f32 to vector<2x1xf32>
    %101 = arith.mulf %100, %99 : vector<2x1xf32>
    %102 = vector.extract_strided_slice %0 {offsets = [0, 5, 0], sizes = [2, 1, 128], strides = [1, 1, 1]} : vector<2x8x128xf32> to vector<2x1x128xf32>
    %103 = vector.shape_cast %102 : vector<2x1x128xf32> to vector<2x128xf32>
    %104 = vector.broadcast %101 : vector<2x1xf32> to vector<2x128xf32>
    %105 = arith.mulf %104, %103 : vector<2x128xf32>
    %106 = arith.addf %93, %105 : vector<2x128xf32>
    %107 = vector.extract_strided_slice %29 {offsets = [0, 5], sizes = [2, 1], strides = [1, 1]} : vector<2x8xf32> to vector<2x1xf32>
    %108 = vector.broadcast %98 : f32 to vector<2x1xf32>
    %109 = arith.mulf %108, %107 : vector<2x1xf32>
    %110 = arith.addf %97, %109 : vector<2x1xf32>
    %c0_26 = arith.constant 0 : index
    %c6 = arith.constant 6 : index
    %111 = memref.load %arg6[%c0_26, %c6] : memref<2x8xf32, #tpu.memory_space<smem>>
    %112 = vector.extract_strided_slice %26 {offsets = [0, 6], sizes = [2, 1], strides = [1, 1]} : vector<2x8xf32> to vector<2x1xf32>
    %113 = vector.broadcast %111 : f32 to vector<2x1xf32>
    %114 = arith.mulf %113, %112 : vector<2x1xf32>
    %115 = vector.extract_strided_slice %0 {offsets = [0, 6, 0], sizes = [2, 1, 128], strides = [1, 1, 1]} : vector<2x8x128xf32> to vector<2x1x128xf32>
    %116 = vector.shape_cast %115 : vector<2x1x128xf32> to vector<2x128xf32>
    %117 = vector.broadcast %114 : vector<2x1xf32> to vector<2x128xf32>
    %118 = arith.mulf %117, %116 : vector<2x128xf32>
    %119 = arith.addf %106, %118 : vector<2x128xf32>
    %120 = vector.extract_strided_slice %29 {offsets = [0, 6], sizes = [2, 1], strides = [1, 1]} : vector<2x8xf32> to vector<2x1xf32>
    %121 = vector.broadcast %111 : f32 to vector<2x1xf32>
    %122 = arith.mulf %121, %120 : vector<2x1xf32>
    %123 = arith.addf %110, %122 : vector<2x1xf32>
    %c0_27 = arith.constant 0 : index
    %c7 = arith.constant 7 : index
    %124 = memref.load %arg6[%c0_27, %c7] : memref<2x8xf32, #tpu.memory_space<smem>>
    %125 = vector.extract_strided_slice %26 {offsets = [0, 7], sizes = [2, 1], strides = [1, 1]} : vector<2x8xf32> to vector<2x1xf32>
    %126 = vector.broadcast %124 : f32 to vector<2x1xf32>
    %127 = arith.mulf %126, %125 : vector<2x1xf32>
    %128 = vector.extract_strided_slice %0 {offsets = [0, 7, 0], sizes = [2, 1, 128], strides = [1, 1, 1]} : vector<2x8x128xf32> to vector<2x1x128xf32>
    %129 = vector.shape_cast %128 : vector<2x1x128xf32> to vector<2x128xf32>
    %130 = vector.broadcast %127 : vector<2x1xf32> to vector<2x128xf32>
    %131 = arith.mulf %130, %129 : vector<2x128xf32>
    %132 = arith.addf %119, %131 : vector<2x128xf32>
    %133 = vector.extract_strided_slice %29 {offsets = [0, 7], sizes = [2, 1], strides = [1, 1]} : vector<2x8xf32> to vector<2x1xf32>
    %134 = vector.broadcast %124 : f32 to vector<2x1xf32>
    %135 = arith.mulf %134, %133 : vector<2x1xf32>
    %136 = arith.addf %123, %135 : vector<2x1xf32>
    %137 = vector.broadcast %136 : vector<2x1xf32> to vector<2x128xf32>
    %138 = arith.addf %132, %137 : vector<2x128xf32>
    %139 = vector.broadcast %30 : vector<1x128xf32> to vector<2x128xf32>
    %140 = arith.mulf %138, %139 : vector<2x128xf32>
    %c0_28 = arith.constant 0 : index
    %c0_29 = arith.constant 0 : index
    %141 = vector.load %arg5[%c0_28, %c0_29] : memref<1x256xf32, #tpu.memory_space<vmem>>, vector<1x128xf32>
    %142 = vector.broadcast %141 : vector<1x128xf32> to vector<2x128xf32>
    %143 = arith.addf %140, %142 : vector<2x128xf32>
    %c0_30 = arith.constant 0 : index
    %c0_31 = arith.constant 0 : index
    %144 = vector.load %arg7[%c0_30, %c0_31] : memref<2x256xf32, #tpu.memory_space<vmem>>, vector<2x128xf32>
    tpu.vector_store %arg7[%c0_30, %c0_31], %143 {strides = array<i32>} : memref<2x256xf32, #tpu.memory_space<vmem>>, vector<2x128xf32>,
    %cst_32 = arith.constant 0.000000e+00 : f32
    %145 = vector.broadcast %cst_32 : f32 to vector<2x128xf32>
    %cst_33 = arith.constant 0.000000e+00 : f32
    %146 = vector.broadcast %cst_33 : f32 to vector<2x1xf32>
    %c1_34 = arith.constant 1 : index
    %c0_35 = arith.constant 0 : index
    %147 = memref.load %arg6[%c1_34, %c0_35] : memref<2x8xf32, #tpu.memory_space<smem>>
    %148 = vector.extract_strided_slice %26 {offsets = [0, 0], sizes = [2, 1], strides = [1, 1]} : vector<2x8xf32> to vector<2x1xf32>
    %149 = vector.broadcast %147 : f32 to vector<2x1xf32>
    %150 = arith.mulf %149, %148 : vector<2x1xf32>
    %151 = vector.extract_strided_slice %0 {offsets = [0, 0, 0], sizes = [2, 1, 128], strides = [1, 1, 1]} : vector<2x8x128xf32> to vector<2x1x128xf32>
    %152 = vector.shape_cast %151 : vector<2x1x128xf32> to vector<2x128xf32>
    %153 = vector.broadcast %150 : vector<2x1xf32> to vector<2x128xf32>
    %154 = arith.mulf %153, %152 : vector<2x128xf32>
    %155 = arith.addf %145, %154 : vector<2x128xf32>
    %156 = vector.extract_strided_slice %29 {offsets = [0, 0], sizes = [2, 1], strides = [1, 1]} : vector<2x8xf32> to vector<2x1xf32>
    %157 = vector.broadcast %147 : f32 to vector<2x1xf32>
    %158 = arith.mulf %157, %156 : vector<2x1xf32>
    %159 = arith.addf %146, %158 : vector<2x1xf32>
    %c1_36 = arith.constant 1 : index
    %c1_37 = arith.constant 1 : index
    %160 = memref.load %arg6[%c1_36, %c1_37] : memref<2x8xf32, #tpu.memory_space<smem>>
    %161 = vector.extract_strided_slice %26 {offsets = [0, 1], sizes = [2, 1], strides = [1, 1]} : vector<2x8xf32> to vector<2x1xf32>
    %162 = vector.broadcast %160 : f32 to vector<2x1xf32>
    %163 = arith.mulf %162, %161 : vector<2x1xf32>
    %164 = vector.extract_strided_slice %0 {offsets = [0, 1, 0], sizes = [2, 1, 128], strides = [1, 1, 1]} : vector<2x8x128xf32> to vector<2x1x128xf32>
    %165 = vector.shape_cast %164 : vector<2x1x128xf32> to vector<2x128xf32>
    %166 = vector.broadcast %163 : vector<2x1xf32> to vector<2x128xf32>
    %167 = arith.mulf %166, %165 : vector<2x128xf32>
    %168 = arith.addf %155, %167 : vector<2x128xf32>
    %169 = vector.extract_strided_slice %29 {offsets = [0, 1], sizes = [2, 1], strides = [1, 1]} : vector<2x8xf32> to vector<2x1xf32>
    %170 = vector.broadcast %160 : f32 to vector<2x1xf32>
    %171 = arith.mulf %170, %169 : vector<2x1xf32>
    %172 = arith.addf %159, %171 : vector<2x1xf32>
    %c1_38 = arith.constant 1 : index
    %c2_39 = arith.constant 2 : index
    %173 = memref.load %arg6[%c1_38, %c2_39] : memref<2x8xf32, #tpu.memory_space<smem>>
    %174 = vector.extract_strided_slice %26 {offsets = [0, 2], sizes = [2, 1], strides = [1, 1]} : vector<2x8xf32> to vector<2x1xf32>
    %175 = vector.broadcast %173 : f32 to vector<2x1xf32>
    %176 = arith.mulf %175, %174 : vector<2x1xf32>
    %177 = vector.extract_strided_slice %0 {offsets = [0, 2, 0], sizes = [2, 1, 128], strides = [1, 1, 1]} : vector<2x8x128xf32> to vector<2x1x128xf32>
    %178 = vector.shape_cast %177 : vector<2x1x128xf32> to vector<2x128xf32>
    %179 = vector.broadcast %176 : vector<2x1xf32> to vector<2x128xf32>
    %180 = arith.mulf %179, %178 : vector<2x128xf32>
    %181 = arith.addf %168, %180 : vector<2x128xf32>
    %182 = vector.extract_strided_slice %29 {offsets = [0, 2], sizes = [2, 1], strides = [1, 1]} : vector<2x8xf32> to vector<2x1xf32>
    %183 = vector.broadcast %173 : f32 to vector<2x1xf32>
    %184 = arith.mulf %183, %182 : vector<2x1xf32>
    %185 = arith.addf %172, %184 : vector<2x1xf32>
    %c1_40 = arith.constant 1 : index
    %c3_41 = arith.constant 3 : index
    %186 = memref.load %arg6[%c1_40, %c3_41] : memref<2x8xf32, #tpu.memory_space<smem>>
    %187 = vector.extract_strided_slice %26 {offsets = [0, 3], sizes = [2, 1], strides = [1, 1]} : vector<2x8xf32> to vector<2x1xf32>
    %188 = vector.broadcast %186 : f32 to vector<2x1xf32>
    %189 = arith.mulf %188, %187 : vector<2x1xf32>
    %190 = vector.extract_strided_slice %0 {offsets = [0, 3, 0], sizes = [2, 1, 128], strides = [1, 1, 1]} : vector<2x8x128xf32> to vector<2x1x128xf32>
    %191 = vector.shape_cast %190 : vector<2x1x128xf32> to vector<2x128xf32>
    %192 = vector.broadcast %189 : vector<2x1xf32> to vector<2x128xf32>
    %193 = arith.mulf %192, %191 : vector<2x128xf32>
    %194 = arith.addf %181, %193 : vector<2x128xf32>
    %195 = vector.extract_strided_slice %29 {offsets = [0, 3], sizes = [2, 1], strides = [1, 1]} : vector<2x8xf32> to vector<2x1xf32>
    %196 = vector.broadcast %186 : f32 to vector<2x1xf32>
    %197 = arith.mulf %196, %195 : vector<2x1xf32>
    %198 = arith.addf %185, %197 : vector<2x1xf32>
    %c1_42 = arith.constant 1 : index
    %c4_43 = arith.constant 4 : index
    %199 = memref.load %arg6[%c1_42, %c4_43] : memref<2x8xf32, #tpu.memory_space<smem>>
    %200 = vector.extract_strided_slice %26 {offsets = [0, 4], sizes = [2, 1], strides = [1, 1]} : vector<2x8xf32> to vector<2x1xf32>
    %201 = vector.broadcast %199 : f32 to vector<2x1xf32>
    %202 = arith.mulf %201, %200 : vector<2x1xf32>
    %203 = vector.extract_strided_slice %0 {offsets = [0, 4, 0], sizes = [2, 1, 128], strides = [1, 1, 1]} : vector<2x8x128xf32> to vector<2x1x128xf32>
    %204 = vector.shape_cast %203 : vector<2x1x128xf32> to vector<2x128xf32>
    %205 = vector.broadcast %202 : vector<2x1xf32> to vector<2x128xf32>
    %206 = arith.mulf %205, %204 : vector<2x128xf32>
    %207 = arith.addf %194, %206 : vector<2x128xf32>
    %208 = vector.extract_strided_slice %29 {offsets = [0, 4], sizes = [2, 1], strides = [1, 1]} : vector<2x8xf32> to vector<2x1xf32>
    %209 = vector.broadcast %199 : f32 to vector<2x1xf32>
    %210 = arith.mulf %209, %208 : vector<2x1xf32>
    %211 = arith.addf %198, %210 : vector<2x1xf32>
    %c1_44 = arith.constant 1 : index
    %c5_45 = arith.constant 5 : index
    %212 = memref.load %arg6[%c1_44, %c5_45] : memref<2x8xf32, #tpu.memory_space<smem>>
    %213 = vector.extract_strided_slice %26 {offsets = [0, 5], sizes = [2, 1], strides = [1, 1]} : vector<2x8xf32> to vector<2x1xf32>
    %214 = vector.broadcast %212 : f32 to vector<2x1xf32>
    %215 = arith.mulf %214, %213 : vector<2x1xf32>
    %216 = vector.extract_strided_slice %0 {offsets = [0, 5, 0], sizes = [2, 1, 128], strides = [1, 1, 1]} : vector<2x8x128xf32> to vector<2x1x128xf32>
    %217 = vector.shape_cast %216 : vector<2x1x128xf32> to vector<2x128xf32>
    %218 = vector.broadcast %215 : vector<2x1xf32> to vector<2x128xf32>
    %219 = arith.mulf %218, %217 : vector<2x128xf32>
    %220 = arith.addf %207, %219 : vector<2x128xf32>
    %221 = vector.extract_strided_slice %29 {offsets = [0, 5], sizes = [2, 1], strides = [1, 1]} : vector<2x8xf32> to vector<2x1xf32>
    %222 = vector.broadcast %212 : f32 to vector<2x1xf32>
    %223 = arith.mulf %222, %221 : vector<2x1xf32>
    %224 = arith.addf %211, %223 : vector<2x1xf32>
    %c1_46 = arith.constant 1 : index
    %c6_47 = arith.constant 6 : index
    %225 = memref.load %arg6[%c1_46, %c6_47] : memref<2x8xf32, #tpu.memory_space<smem>>
    %226 = vector.extract_strided_slice %26 {offsets = [0, 6], sizes = [2, 1], strides = [1, 1]} : vector<2x8xf32> to vector<2x1xf32>
    %227 = vector.broadcast %225 : f32 to vector<2x1xf32>
    %228 = arith.mulf %227, %226 : vector<2x1xf32>
    %229 = vector.extract_strided_slice %0 {offsets = [0, 6, 0], sizes = [2, 1, 128], strides = [1, 1, 1]} : vector<2x8x128xf32> to vector<2x1x128xf32>
    %230 = vector.shape_cast %229 : vector<2x1x128xf32> to vector<2x128xf32>
    %231 = vector.broadcast %228 : vector<2x1xf32> to vector<2x128xf32>
    %232 = arith.mulf %231, %230 : vector<2x128xf32>
    %233 = arith.addf %220, %232 : vector<2x128xf32>
    %234 = vector.extract_strided_slice %29 {offsets = [0, 6], sizes = [2, 1], strides = [1, 1]} : vector<2x8xf32> to vector<2x1xf32>
    %235 = vector.broadcast %225 : f32 to vector<2x1xf32>
    %236 = arith.mulf %235, %234 : vector<2x1xf32>
    %237 = arith.addf %224, %236 : vector<2x1xf32>
    %c1_48 = arith.constant 1 : index
    %c7_49 = arith.constant 7 : index
    %238 = memref.load %arg6[%c1_48, %c7_49] : memref<2x8xf32, #tpu.memory_space<smem>>
    %239 = vector.extract_strided_slice %26 {offsets = [0, 7], sizes = [2, 1], strides = [1, 1]} : vector<2x8xf32> to vector<2x1xf32>
    %240 = vector.broadcast %238 : f32 to vector<2x1xf32>
    %241 = arith.mulf %240, %239 : vector<2x1xf32>
    %242 = vector.extract_strided_slice %0 {offsets = [0, 7, 0], sizes = [2, 1, 128], strides = [1, 1, 1]} : vector<2x8x128xf32> to vector<2x1x128xf32>
    %243 = vector.shape_cast %242 : vector<2x1x128xf32> to vector<2x128xf32>
    %244 = vector.broadcast %241 : vector<2x1xf32> to vector<2x128xf32>
    %245 = arith.mulf %244, %243 : vector<2x128xf32>
    %246 = arith.addf %233, %245 : vector<2x128xf32>
    %247 = vector.extract_strided_slice %29 {offsets = [0, 7], sizes = [2, 1], strides = [1, 1]} : vector<2x8xf32> to vector<2x1xf32>
    %248 = vector.broadcast %238 : f32 to vector<2x1xf32>
    %249 = arith.mulf %248, %247 : vector<2x1xf32>
    %250 = arith.addf %237, %249 : vector<2x1xf32>
    %251 = vector.broadcast %250 : vector<2x1xf32> to vector<2x128xf32>
    %252 = arith.addf %246, %251 : vector<2x128xf32>
    %253 = vector.broadcast %30 : vector<1x128xf32> to vector<2x128xf32>
    %254 = arith.mulf %252, %253 : vector<2x128xf32>
    %c0_50 = arith.constant 0 : index
    %c128 = arith.constant 128 : index
    %255 = vector.load %arg5[%c0_50, %c128] : memref<1x256xf32, #tpu.memory_space<vmem>>, vector<1x128xf32>
    %256 = vector.broadcast %255 : vector<1x128xf32> to vector<2x128xf32>
    %257 = arith.addf %254, %256 : vector<2x128xf32>
    %c0_51 = arith.constant 0 : index
    %c128_52 = arith.constant 128 : index
    %258 = vector.load %arg7[%c0_51, %c128_52] : memref<2x256xf32, #tpu.memory_space<vmem>>, vector<2x128xf32>
    tpu.vector_store %arg7[%c0_51, %c128_52], %257 {strides = array<i32>} : memref<2x256xf32, #tpu.memory_space<vmem>>, vector<2x128xf32>,
    return
  }
  func.func @transform_0(%arg0: i32) -> (i32, i32, i32) {
    %c0_i32 = arith.constant 0 : i32
    %c0_i32_0 = arith.constant 0 : i32
    %c0_i32_1 = arith.constant 0 : i32
    return %arg0, %c0_i32, %c0_i32_0 : i32, i32, i32
  }
  func.func @transform_1(%arg0: i32) -> (i32, i32) {
    %c0_i32 = arith.constant 0 : i32
    %c0_i32_0 = arith.constant 0 : i32
    %c0_i32_1 = arith.constant 0 : i32
    return %c0_i32, %c0_i32_0 : i32, i32
  }
  func.func @transform_2(%arg0: i32) -> (i32, i32) {
    %c0_i32 = arith.constant 0 : i32
    %c0_i32_0 = arith.constant 0 : i32
    %c0_i32_1 = arith.constant 0 : i32
    return %c0_i32, %c0_i32_0 : i32, i32
  }
  func.func @transform_3(%arg0: i32) -> (i32, i32) {
    %c0_i32 = arith.constant 0 : i32
    %c0_i32_0 = arith.constant 0 : i32
    %c0_i32_1 = arith.constant 0 : i32
    return %c0_i32, %c0_i32_0 : i32, i32
  }
  func.func @transform_4(%arg0: i32) -> (i32, i32) {
    %c0_i32 = arith.constant 0 : i32
    %c0_i32_0 = arith.constant 0 : i32
    %c0_i32_1 = arith.constant 0 : i32
    return %c0_i32, %c0_i32_0 : i32, i32
  }
  func.func @transform_5(%arg0: i32) -> (i32, i32) {
    %c0_i32 = arith.constant 0 : i32
    %c0_i32_0 = arith.constant 0 : i32
    %c0_i32_1 = arith.constant 0 : i32
    return %c0_i32, %c0_i32_0 : i32, i32
  }
  func.func @transform_6(%arg0: i32) -> (i32, i32) {
    %c0_i32 = arith.constant 0 : i32
    %c0_i32_0 = arith.constant 0 : i32
    return %arg0, %c0_i32 : i32, i32
  }
}

</mosaic_0001>

<llo_original>
// kernel: tpu_custom_call.1
$region0: #{tpu_custom_call.1}
  #allocation0 [shape = 'u32[]', space=smem, size = 0x4, offset = 0x4, fixed_abs, tag = 'smem constant byte address 0x4 - core index']
  #allocation1 [shape = 'u32[144,128]{1,0:T(1,128)}', space=vmem, size = 0x12000, scoped, tag = 'internal scratch']
  %s0 = inlined_call_operand.hbm [shape: f32[2,8,128], index: 0, kind: input, shape index: {}]
  %s1 = inlined_call_operand.vmem [shape: f32[8,2], index: 1, kind: input, shape index: {}]
  %s2 = inlined_call_operand.vmem [shape: f32[2,8], index: 2, kind: input, shape index: {}]
  %s3 = inlined_call_operand.vmem [shape: f32[1,128], index: 3, kind: input, shape index: {}]
  %s4 = inlined_call_operand.vmem [shape: f32[1,256], index: 4, kind: input, shape index: {}]
  %s5 = inlined_call_operand.vmem [shape: f32[2,8], index: 5, kind: input, shape index: {}]
  %s6 = inlined_call_operand.hbm [shape: f32[2,256], index: 6, kind: output, shape index: {}]
  %s7 = sld [smem:[#allocation0]]
  $region42: #{tpu_custom_call.1} parent=0
    _
  %s9 = ssub.s32 1, %s7
  %s10 = scalar_select 0, %s9, %s7
  $region1: #{tpu_custom_call.1} parent=0
    #allocation2 [shape = 'u8[8192]{0}', space=vmem, size = 0x2000, scoped, tag = 'input window, operand 0, single buffered']
    #allocation3 [shape = 's32[1]{0}', space=sflag, size = 0x4, scoped, tag = 'scoped memory for tpu_custom_call.1']
    #allocation4 [shape = 's32[1]{0}', space=sflag, size = 0x4, scoped, tag = 'scoped memory for tpu_custom_call.1']
    #allocation5 [shape = 's32[1]{0}', space=sflag, size = 0x4, scoped, tag = 'scoped memory for tpu_custom_call.1']
    #allocation6 [shape = 'u8[1024]{0}', space=smem, size = 0x400, scoped, tag = 'input window, operand 5, single buffered']
    #allocation7 [shape = 'u8[2048]{0}', space=vmem, size = 0x800, scoped, tag = 'output window, operand 0, single buffered']
    %11 = vsyncpa [#allocation3], 0
    %12 = vsyncpa [#allocation5], 0
    %13 = vsyncpa [#allocation4], 0
    // Predicated region
    $region2: #{tpu_custom_call.1} parent=1 // pred_check
      _
    $region3: #{tpu_custom_call.1} parent=1 // pred_check_branch
      %15 = sbr.rel (0) target = $region5
    $region4: #{tpu_custom_call.1} parent=1 // pred_region
      %s17 = ssub.s32 256, 256
      %18 = vsyncadd [#allocation3], %s17
      %s19 = sshll.u32 [#allocation2], 4
      %s20 = int_to_ptr.vmem [resolvable:$true] %s19
      %25 = dma.hbm_to_vmem [thread:$0]  %s0, 256, %s20, [#allocation3], 128, 128, 8
    $region5: #{tpu_custom_call.1} parent=1 // pred_fallthru
      _
    // Predicated region
    $region6: #{tpu_custom_call.1} parent=1 // pred_check
      _
    $region7: #{tpu_custom_call.1} parent=1 // pred_check_branch
      %27 = sbr.rel (0) target = $region9
    $region8: #{tpu_custom_call.1} parent=1 // pred_region
      _
    $region9: #{tpu_custom_call.1} parent=1 // pred_fallthru
      _
    // Predicated region
    $region10: #{tpu_custom_call.1} parent=1 // pred_check
      _
    $region11: #{tpu_custom_call.1} parent=1 // pred_check_branch
      %29 = sbr.rel (0) target = $region13
    $region12: #{tpu_custom_call.1} parent=1 // pred_region
      _
    $region13: #{tpu_custom_call.1} parent=1 // pred_fallthru
      _
    // Predicated region
    $region14: #{tpu_custom_call.1} parent=1 // pred_check
      _
    $region15: #{tpu_custom_call.1} parent=1 // pred_check_branch
      %31 = sbr.rel (0) target = $region17
    $region16: #{tpu_custom_call.1} parent=1 // pred_region
      _
    $region17: #{tpu_custom_call.1} parent=1 // pred_fallthru
      _
    // Predicated region
    $region18: #{tpu_custom_call.1} parent=1 // pred_check
      _
    $region19: #{tpu_custom_call.1} parent=1 // pred_check_branch
      %33 = sbr.rel (0) target = $region21
    $region20: #{tpu_custom_call.1} parent=1 // pred_region
      _
    $region21: #{tpu_custom_call.1} parent=1 // pred_fallthru
      _
    // Predicated region
    $region22: #{tpu_custom_call.1} parent=1 // pred_check
      _
    $region23: #{tpu_custom_call.1} parent=1 // pred_check_branch
      %35 = sbr.rel (0) target = $region25
    $region24: #{tpu_custom_call.1} parent=1 // pred_region
      %s37 = ssub.s32 32, 32
      %38 = vsyncadd [#allocation5], %s37
      %s40 = sshll.u32 %s5, 4
      %s41 = int_to_ptr.vmem [resolvable:$true] %s40
      %43 = dma.vmem_to_smem %s41, 32, [#allocation6], [#allocation5]
    $region25: #{tpu_custom_call.1} parent=1 // pred_fallthru
      _
    // Predicated region
    $region26: #{tpu_custom_call.1} parent=1 // pred_check
      _
    $region27: #{tpu_custom_call.1} parent=1 // pred_check_branch
      %45 = sbr.rel (0) target = $region29
    $region28: #{tpu_custom_call.1} parent=1 // pred_region
      %46 = dma.done [#allocation3], 256
    $region29: #{tpu_custom_call.1} parent=1 // pred_fallthru
      _
    // Predicated region
    $region30: #{tpu_custom_call.1} parent=1 // pred_check
      _
    $region31: #{tpu_custom_call.1} parent=1 // pred_check_branch
      %48 = sbr.rel (0) target = $region33
    $region32: #{tpu_custom_call.1} parent=1 // pred_region
      %49 = dma.done [#allocation5], 32
    $region33: #{tpu_custom_call.1} parent=1 // pred_fallthru
      _
    %50 = sfence
    %v51 = vld [vmem:[#allocation2] sm:$0xff]
    %v52 = vld [vmem:[#allocation2 + $0x8] sm:$0xff]
    %53 = vadd.xlane.f32.xlu0 %v51
    %v54 = vpop.xlane.xlu0 %53
    %55 = vadd.xlane.f32.xlu0 %v52
    %v56 = vpop.xlane.xlu0 %55
    %v57 = vrcp.pop 128.0
    %v58 = vmul.f32 %v54, %v57
    %v59 = vmul.f32 %v56, %v57
    %v60 = vmul.f32 %v51, %v51
    %v61 = vmul.f32 %v52, %v52
    %62 = vadd.xlane.f32.xlu0 %v60
    %v63 = vpop.xlane.xlu0 %62
    %64 = vadd.xlane.f32.xlu0 %v61
    %v65 = vpop.xlane.xlu0 %64
    %v66 = vmul.f32 %v63, %v57
    %v67 = vmul.f32 %v65, %v57
    %v68 = vmul.f32 %v58, %v58
    %v69 = vmul.f32 %v59, %v59
    %v70 = vsub.f32 %v66, %v68
    %v71 = vsub.f32 %v67, %v69
    %v72 = vld [vmem:[%s1] sm:$0xff]
    %v73 = vld [vmem:[%s2] sm:$0x3]
    %v76 = vlaneseq
    %v77 = vand.u32 %v76, 127
    %v78 = vlaneseq
    %v79 = vshrl.u32 %v78, 7
    %v80 = vsub.s32 %v77, %v79
    %v81 = vrot.slane %v58, %v80
    %v82 = vlaneseq
    %v83 = vshrl.u32 %v82, 7
    %v84 = vsub.s32 %v77, %v83
    %v85 = vrot.slane %v59, %v84
    %vm86 = vcmask 1041409
    %v87 = vsel %vm86, %v85, %v81
    %vm88 = vcmask 64512
    %v89 = vsel %vm88, %v87, 0
    %91 = vmatprep.subr.mxu0 0.0
    %92 = vmatpush1.msra.mxu0 0.0
    %93 = vmatprep.subr.mxu0 0.0
    %94 = vmatpush1.msra.mxu0 0.0
    %95 = vmatprep.subr.mxu0 0.0
    %96 = vmatpush1.msra.mxu0 0.0
    %97 = vmatprep.subr.mxu0 0.0
    %98 = vmatpush1.msra.mxu0 0.0
    %99 = vmatprep.subr.mxu0 0.0
    %100 = vmatpush1.msra.mxu0 0.0
    %101 = vmatprep.subr.mxu0 0.0
    %102 = vmatpush1.msra.mxu0 0.0
    %103 = vmatprep.subr.mxu0 0.0
    %104 = vmatpush1.msra.mxu0 0.0
    %105 = vmatprep.subr.mxu0 0.0
    %106 = vmatpush1.msra.mxu0 0.0
    %107 = vmatprep.subr.mxu0 0.0
    %108 = vmatpush1.msra.mxu0 0.0
    %109 = vmatprep.subr.mxu0 0.0
    %110 = vmatpush1.msra.mxu0 0.0
    %111 = vmatprep.subr.mxu0 0.0
    %112 = vmatpush1.msra.mxu0 0.0
    %113 = vmatprep.subr.mxu0 0.0
    %114 = vmatpush1.msra.mxu0 0.0
    %115 = vmatprep.subr.mxu0 0.0
    %116 = vmatpush1.msra.mxu0 0.0
    %117 = vmatprep.subr.mxu0 0.0
    %118 = vmatpush1.msra.mxu0 0.0
    %119 = vmatprep.subr.mxu0 0.0
    %120 = vmatpush1.msra.mxu0 0.0
    %121 = vmatprep.subr.mxu0 0.0
    %122 = vmatpush1.msra.mxu0 %v72
    %123 = vmatprep.subr.mxu0 0.0
    %124 = vmatpush2.msra.mxu0 0.0
    %125 = vmatprep.subr.mxu0 0.0
    %126 = vmatpush2.msra.mxu0 0.0
    %127 = vmatprep.subr.mxu0 0.0
    %128 = vmatpush2.msra.mxu0 0.0
    %129 = vmatprep.subr.mxu0 0.0
    %130 = vmatpush2.msra.mxu0 0.0
    %131 = vmatprep.subr.mxu0 0.0
    %132 = vmatpush2.msra.mxu0 0.0
    %133 = vmatprep.subr.mxu0 0.0
    %134 = vmatpush2.msra.mxu0 0.0
    %135 = vmatprep.subr.mxu0 0.0
    %136 = vmatpush2.msra.mxu0 0.0
    %137 = vmatprep.subr.mxu0 0.0
    %138 = vmatpush2.msra.mxu0 0.0
    %139 = vmatprep.subr.mxu0 0.0
    %140 = vmatpush2.msra.mxu0 0.0
    %141 = vmatprep.subr.mxu0 0.0
    %142 = vmatpush2.msra.mxu0 0.0
    %143 = vmatprep.subr.mxu0 0.0
    %144 = vmatpush2.msra.mxu0 0.0
    %145 = vmatprep.subr.mxu0 0.0
    %146 = vmatpush2.msra.mxu0 0.0
    %147 = vmatprep.subr.mxu0 0.0
    %148 = vmatpush2.msra.mxu0 0.0
    %149 = vmatprep.subr.mxu0 0.0
    %150 = vmatpush2.msra.mxu0 0.0
    %151 = vmatprep.subr.mxu0 0.0
    %152 = vmatpush2.msra.mxu0 0.0
    %153 = vmatprep.subr.mxu0 0.0
    %154 = vmatpush2.msra.mxu0 0.0
    %155 = vmatprep.mubr.f32.mxu0 0.0
    %156 = vmatmul.mubr.f32.gmra.mxu0 %v89
    %v157 = vpop.f32.mrf.mxu0
    %v158 = vadd.f32 0.0, %v157
    %v159 = vpop.f32.mrf.mxu0
    %160 = vdwg.mxu0
    %v161 = vmax.f32 %v158, 0.0
    %vm162 = vcmask 15360
    %v164 = vsel %vm162, %v161, 0
    %vm166 = vcmask 1041408
    %v168 = vsel %vm166, %v73, 0
    %170 = vmatprep.subr.mxu0 0.0
    %171 = vmatpush1.msra.mxu0 0.0
    %172 = vmatprep.subr.mxu0 0.0
    %173 = vmatpush1.msra.mxu0 0.0
    %174 = vmatprep.subr.mxu0 0.0
    %175 = vmatpush1.msra.mxu0 0.0
    %176 = vmatprep.subr.mxu0 0.0
    %177 = vmatpush1.msra.mxu0 0.0
    %178 = vmatprep.subr.mxu0 0.0
    %179 = vmatpush1.msra.mxu0 0.0
    %180 = vmatprep.subr.mxu0 0.0
    %181 = vmatpush1.msra.mxu0 0.0
    %182 = vmatprep.subr.mxu0 0.0
    %183 = vmatpush1.msra.mxu0 0.0
    %184 = vmatprep.subr.mxu0 0.0
    %185 = vmatpush1.msra.mxu0 0.0
    %186 = vmatprep.subr.mxu0 0.0
    %187 = vmatpush1.msra.mxu0 0.0
    %188 = vmatprep.subr.mxu0 0.0
    %189 = vmatpush1.msra.mxu0 0.0
    %190 = vmatprep.subr.mxu0 0.0
    %191 = vmatpush1.msra.mxu0 0.0
    %192 = vmatprep.subr.mxu0 0.0
    %193 = vmatpush1.msra.mxu0 0.0
    %194 = vmatprep.subr.mxu0 0.0
    %195 = vmatpush1.msra.mxu0 0.0
    %196 = vmatprep.subr.mxu0 0.0
    %197 = vmatpush1.msra.mxu0 0.0
    %198 = vmatprep.subr.mxu0 0.0
    %199 = vmatpush1.msra.mxu0 0.0
    %200 = vmatprep.subr.mxu0 0.0
    %201 = vmatpush1.msra.mxu0 %v168
    %202 = vmatprep.subr.mxu0 0.0
    %203 = vmatpush2.msra.mxu0 0.0
    %204 = vmatprep.subr.mxu0 0.0
    %205 = vmatpush2.msra.mxu0 0.0
    %206 = vmatprep.subr.mxu0 0.0
    %207 = vmatpush2.msra.mxu0 0.0
    %208 = vmatprep.subr.mxu0 0.0
    %209 = vmatpush2.msra.mxu0 0.0
    %210 = vmatprep.subr.mxu0 0.0
    %211 = vmatpush2.msra.mxu0 0.0
    %212 = vmatprep.subr.mxu0 0.0
    %213 = vmatpush2.msra.mxu0 0.0
    %214 = vmatprep.subr.mxu0 0.0
    %215 = vmatpush2.msra.mxu0 0.0
    %216 = vmatprep.subr.mxu0 0.0
    %217 = vmatpush2.msra.mxu0 0.0
    %218 = vmatprep.subr.mxu0 0.0
    %219 = vmatpush2.msra.mxu0 0.0
    %220 = vmatprep.subr.mxu0 0.0
    %221 = vmatpush2.msra.mxu0 0.0
    %222 = vmatprep.subr.mxu0 0.0
    %223 = vmatpush2.msra.mxu0 0.0
    %224 = vmatprep.subr.mxu0 0.0
    %225 = vmatpush2.msra.mxu0 0.0
    %226 = vmatprep.subr.mxu0 0.0
    %227 = vmatpush2.msra.mxu0 0.0
    %228 = vmatprep.subr.mxu0 0.0
    %229 = vmatpush2.msra.mxu0 0.0
    %230 = vmatprep.subr.mxu0 0.0
    %231 = vmatpush2.msra.mxu0 0.0
    %232 = vmatprep.subr.mxu0 0.0
    %233 = vmatpush2.msra.mxu0 0.0
    %234 = vmatprep.mubr.f32.mxu0 0.0
    %235 = vmatmul.mubr.f32.gmra.mxu0 %v164
    %v236 = vpop.f32.mrf.mxu0
    %v237 = vadd.f32 0.0, %v236
    %v238 = vpop.f32.mrf.mxu0
    %239 = vdwg.mxu0
    %v240 = vxor.u32 %v237, 2147483648
    %v241 = vmul.f32 %v240, 1.442695
    %v242 = vpow.pop %v241
    %v243 = vadd.f32 %v242, 1.0
    %v244 = vrcp.pop %v243
    %v245 = vmul.f32 1.0, %v244
    %v246 = vmul.f32 %v245, %v245
    %v249 = vlaneseq
    %v250 = vshrl.u32 %v249, 7
    %v251 = vsub.s32 %v77, %v250
    %v252 = vrot.slane %v70, %v251
    %v253 = vlaneseq
    %v254 = vshrl.u32 %v253, 7
    %v255 = vsub.s32 %v77, %v254
    %v256 = vrot.slane %v71, %v255
    %v257 = vsel %vm86, %v256, %v252
    %v259 = vmul.f32 %v246, %v257
    %v260 = vadd.f32 %v259, 1e-05
    %v261 = vrsqrt.pop %v260
    %v262 = vmul.f32 %v245, %v261
    %v263 = vsub.f32 0.0, %v58
    %v264 = vsub.f32 0.0, %v59
    %v266 = vlaneseq
    %v267 = vshrl.u32 %v266, 7
    %v268 = vsub.s32 0, %v267
    %v269 = vrot.slane %v262, %v268
    %271 = vbcast.lane.b32.xlu0 %v269, 256
    %v272 = vpop.permute.xlu0 %271
    %v273 = vlaneseq
    %v274 = vshrl.u32 %v273, 7
    %v275 = vsub.s32 1, %v274
    %v276 = vrot.slane %v262, %v275
    %278 = vbcast.lane.b32.xlu0 %v276, 256
    %v279 = vpop.permute.xlu0 %278
    %v282 = vmul.f32 %v263, %v272
    %v283 = vmul.f32 %v264, %v279
    %v284 = vld [vmem:[%s3] sm:$0x1]
    %s285 = sld [smem:[#allocation6]]
    %v286 = vstv %s285
    %v287 = vmul.f32 %v286, %v262
    %289 = vset.pattern.permute.xlu0 0
    %290 = vperm.xlu0 %289, %v287
    %v291 = vpop.permute.xlu0 %290
    %v295 = vrot.slane %v52, 7
    %v296 = vsel %vm86, %v295, %v51
    %v298 = vmul.f32 %v291, %v296
    %v299 = vadd.f32 %v298, 0.0
    %v300 = vmul.f32 %v286, %v282
    %v301 = vmul.f32 %v286, %v283
    %v302 = vadd.f32 %v300, 0.0
    %v303 = vadd.f32 %v301, 0.0
    %s304 = sld [smem:[#allocation6 + $0x1]]
    %v305 = vstv %s304
    %v306 = vmul.f32 %v305, %v262
    %308 = vset.pattern.permute.xlu0 1
    %309 = vperm.xlu0 %308, %v306
    %v310 = vpop.permute.xlu0 %309
    %v312 = vrot.slane %v51, 1
    %v313 = vsel %vm86, %v52, %v312
    %v315 = vmul.f32 %v310, %v313
    %v316 = vadd.f32 %v299, %v315
    %v317 = vmul.f32 %v305, %v282
    %v318 = vmul.f32 %v305, %v283
    %v321 = vrot.slane %v317, 1
    %v322 = vrot.slane %v318, 1
    %v325 = vadd.f32 %v302, %v321
    %v326 = vadd.f32 %v303, %v322
    %s327 = sld [smem:[#allocation6 + $0x2]]
    %v328 = vstv %s327
    %v329 = vmul.f32 %v328, %v262
    %331 = vset.pattern.permute.xlu0 2
    %332 = vperm.xlu0 %331, %v329
    %v333 = vpop.permute.xlu0 %332
    %v335 = vrot.slane %v51, 2
    %v336 = vrot.slane %v52, 1
    %v337 = vsel %vm86, %v336, %v335
    %v339 = vmul.f32 %v333, %v337
    %v340 = vadd.f32 %v316, %v339
    %v341 = vmul.f32 %v328, %v282
    %v342 = vmul.f32 %v328, %v283
    %v345 = vrot.slane %v341, 2
    %v346 = vrot.slane %v342, 2
    %v349 = vadd.f32 %v325, %v345
    %v350 = vadd.f32 %v326, %v346
    %s351 = sld [smem:[#allocation6 + $0x3]]
    %v352 = vstv %s351
    %v353 = vmul.f32 %v352, %v262
    %355 = vset.pattern.permute.xlu0 3
    %356 = vperm.xlu0 %355, %v353
    %v357 = vpop.permute.xlu0 %356
    %v359 = vrot.slane %v51, 3
    %v360 = vrot.slane %v52, 2
    %v361 = vsel %vm86, %v360, %v359
    %v363 = vmul.f32 %v357, %v361
    %v364 = vadd.f32 %v340, %v363
    %v365 = vmul.f32 %v352, %v282
    %v366 = vmul.f32 %v352, %v283
    %v369 = vrot.slane %v365, 3
    %v370 = vrot.slane %v366, 3
    %v373 = vadd.f32 %v349, %v369
    %v374 = vadd.f32 %v350, %v370
    %s375 = sld [smem:[#allocation6 + $0x4]]
    %v376 = vstv %s375
    %v377 = vmul.f32 %v376, %v262
    %379 = vset.pattern.permute.xlu0 4
    %380 = vperm.xlu0 %379, %v377
    %v381 = vpop.permute.xlu0 %380
    %v383 = vrot.slane %v51, 4
    %v384 = vrot.slane %v52, 3
    %v385 = vsel %vm86, %v384, %v383
    %v387 = vmul.f32 %v381, %v385
    %v388 = vadd.f32 %v364, %v387
    %v389 = vmul.f32 %v376, %v282
    %v390 = vmul.f32 %v376, %v283
    %v393 = vrot.slane %v389, 4
    %v394 = vrot.slane %v390, 4
    %v397 = vadd.f32 %v373, %v393
    %v398 = vadd.f32 %v374, %v394
    %s399 = sld [smem:[#allocation6 + $0x5]]
    %v400 = vstv %s399
    %v401 = vmul.f32 %v400, %v262
    %403 = vset.pattern.permute.xlu0 5
    %404 = vperm.xlu0 %403, %v401
    %v405 = vpop.permute.xlu0 %404
    %v407 = vrot.slane %v51, 5
    %v408 = vrot.slane %v52, 4
    %v409 = vsel %vm86, %v408, %v407
    %v411 = vmul.f32 %v405, %v409
    %v412 = vadd.f32 %v388, %v411
    %v413 = vmul.f32 %v400, %v282
    %v414 = vmul.f32 %v400, %v283
    %v417 = vrot.slane %v413, 5
    %v418 = vrot.slane %v414, 5
    %v421 = vadd.f32 %v397, %v417
    %v422 = vadd.f32 %v398, %v418
    %s423 = sld [smem:[#allocation6 + $0x6]]
    %v424 = vstv %s423
    %v425 = vmul.f32 %v424, %v262
    %427 = vset.pattern.permute.xlu0 6
    %428 = vperm.xlu0 %427, %v425
    %v429 = vpop.permute.xlu0 %428
    %v431 = vrot.slane %v51, 6
    %v432 = vrot.slane %v52, 5
    %v433 = vsel %vm86, %v432, %v431
    %v435 = vmul.f32 %v429, %v433
    %v436 = vadd.f32 %v412, %v435
    %v437 = vmul.f32 %v424, %v282
    %v438 = vmul.f32 %v424, %v283
    %v441 = vrot.slane %v437, 6
    %v442 = vrot.slane %v438, 6
    %v445 = vadd.f32 %v421, %v441
    %v446 = vadd.f32 %v422, %v442
    %s447 = sld [smem:[#allocation6 + $0x7]]
    %v448 = vstv %s447
    %v449 = vmul.f32 %v448, %v262
    %451 = vset.pattern.permute.xlu0 7
    %452 = vperm.xlu0 %451, %v449
    %v453 = vpop.permute.xlu0 %452
    %v455 = vrot.slane %v51, 7
    %v456 = vrot.slane %v52, 6
    %v457 = vsel %vm86, %v456, %v455
    %v459 = vmul.f32 %v453, %v457
    %v460 = vadd.f32 %v436, %v459
    %v461 = vmul.f32 %v448, %v282
    %v462 = vmul.f32 %v448, %v283
    %v465 = vrot.slane %v461, 7
    %v466 = vrot.slane %v462, 7
    %v469 = vadd.f32 %v445, %v465
    %v470 = vadd.f32 %v446, %v466
    %v471 = vlaneseq
    %v472 = vshrl.u32 %v471, 7
    %v473 = vsub.s32 0, %v472
    %v474 = vrot.slane %v469, %v473
    %v475 = vlaneseq
    %v476 = vshrl.u32 %v475, 7
    %v477 = vsub.s32 0, %v476
    %v478 = vrot.slane %v470, %v477
    %481 = vset.pattern.permute.xlu0 0
    %482 = vperm.xlu0 %481, %v474
    %v483 = vpop.permute.xlu0 %482
    %484 = vset.pattern.permute.xlu0 0
    %485 = vperm.xlu0 %484, %v478
    %v486 = vpop.permute.xlu0 %485
    %v487 = vsel %vm86, %v486, %v483
    %v489 = vadd.f32 %v460, %v487
    %v491 = vlaneseq
    %v492 = vshrl.u32 %v491, 7
    %v493 = vsub.s32 0, %v492
    %v494 = vrot.slane %v284, %v493
    %v496 = vmul.f32 %v489, %v494
    %v497 = vld [vmem:[%s4] sm:$0x1]
    %v499 = vlaneseq
    %v500 = vshrl.u32 %v499, 7
    %v501 = vsub.s32 0, %v500
    %v502 = vrot.slane %v497, %v501
    %v504 = vadd.f32 %v496, %v502
    %505 = vst [vmem:[#allocation7] sm:$0x3] %v504
    %s506 = sld [smem:[#allocation6 + $0x80]]
    %v507 = vstv %s506
    %v508 = vmul.f32 %v507, %v262
    %510 = vset.pattern.permute.xlu0 0
    %511 = vperm.xlu0 %510, %v508
    %v512 = vpop.permute.xlu0 %511
    %v514 = vmul.f32 %v512, %v296
    %v515 = vadd.f32 %v514, 0.0
    %v516 = vmul.f32 %v507, %v282
    %v517 = vmul.f32 %v507, %v283
    %v518 = vadd.f32 %v516, 0.0
    %v519 = vadd.f32 %v517, 0.0
    %s520 = sld [smem:[#allocation6 + $0x81]]
    %v521 = vstv %s520
    %v522 = vmul.f32 %v521, %v262
    %524 = vset.pattern.permute.xlu0 1
    %525 = vperm.xlu0 %524, %v522
    %v526 = vpop.permute.xlu0 %525
    %v528 = vmul.f32 %v526, %v313
    %v529 = vadd.f32 %v515, %v528
    %v530 = vmul.f32 %v521, %v282
    %v531 = vmul.f32 %v521, %v283
    %v534 = vrot.slane %v530, 1
    %v535 = vrot.slane %v531, 1
    %v538 = vadd.f32 %v518, %v534
    %v539 = vadd.f32 %v519, %v535
    %s540 = sld [smem:[#allocation6 + $0x82]]
    %v541 = vstv %s540
    %v542 = vmul.f32 %v541, %v262
    %544 = vset.pattern.permute.xlu0 2
    %545 = vperm.xlu0 %544, %v542
    %v546 = vpop.permute.xlu0 %545
    %v548 = vmul.f32 %v546, %v337
    %v549 = vadd.f32 %v529, %v548
    %v550 = vmul.f32 %v541, %v282
    %v551 = vmul.f32 %v541, %v283
    %v554 = vrot.slane %v550, 2
    %v555 = vrot.slane %v551, 2
    %v558 = vadd.f32 %v538, %v554
    %v559 = vadd.f32 %v539, %v555
    %s560 = sld [smem:[#allocation6 + $0x83]]
    %v561 = vstv %s560
    %v562 = vmul.f32 %v561, %v262
    %564 = vset.pattern.permute.xlu0 3
    %565 = vperm.xlu0 %564, %v562
    %v566 = vpop.permute.xlu0 %565
    %v568 = vmul.f32 %v566, %v361
    %v569 = vadd.f32 %v549, %v568
    %v570 = vmul.f32 %v561, %v282
    %v571 = vmul.f32 %v561, %v283
    %v574 = vrot.slane %v570, 3
    %v575 = vrot.slane %v571, 3
    %v578 = vadd.f32 %v558, %v574
    %v579 = vadd.f32 %v559, %v575
    %s580 = sld [smem:[#allocation6 + $0x84]]
    %v581 = vstv %s580
    %v582 = vmul.f32 %v581, %v262
    %584 = vset.pattern.permute.xlu0 4
    %585 = vperm.xlu0 %584, %v582
    %v586 = vpop.permute.xlu0 %585
    %v588 = vmul.f32 %v586, %v385
    %v589 = vadd.f32 %v569, %v588
    %v590 = vmul.f32 %v581, %v282
    %v591 = vmul.f32 %v581, %v283
    %v594 = vrot.slane %v590, 4
    %v595 = vrot.slane %v591, 4
    %v598 = vadd.f32 %v578, %v594
    %v599 = vadd.f32 %v579, %v595
    %s600 = sld [smem:[#allocation6 + $0x85]]
    %v601 = vstv %s600
    %v602 = vmul.f32 %v601, %v262
    %604 = vset.pattern.permute.xlu0 5
    %605 = vperm.xlu0 %604, %v602
    %v606 = vpop.permute.xlu0 %605
    %v608 = vmul.f32 %v606, %v409
    %v609 = vadd.f32 %v589, %v608
    %v610 = vmul.f32 %v601, %v282
    %v611 = vmul.f32 %v601, %v283
    %v614 = vrot.slane %v610, 5
    %v615 = vrot.slane %v611, 5
    %v618 = vadd.f32 %v598, %v614
    %v619 = vadd.f32 %v599, %v615
    %s620 = sld [smem:[#allocation6 + $0x86]]
    %v621 = vstv %s620
    %v622 = vmul.f32 %v621, %v262
    %624 = vset.pattern.permute.xlu0 6
    %625 = vperm.xlu0 %624, %v622
    %v626 = vpop.permute.xlu0 %625
    %v628 = vmul.f32 %v626, %v433
    %v629 = vadd.f32 %v609, %v628
    %v630 = vmul.f32 %v621, %v282
    %v631 = vmul.f32 %v621, %v283
    %v634 = vrot.slane %v630, 6
    %v635 = vrot.slane %v631, 6
    %v638 = vadd.f32 %v618, %v634
    %v639 = vadd.f32 %v619, %v635
    %s640 = sld [smem:[#allocation6 + $0x87]]
    %v641 = vstv %s640
    %v642 = vmul.f32 %v641, %v262
    %644 = vset.pattern.permute.xlu0 7
    %645 = vperm.xlu0 %644, %v642
    %v646 = vpop.permute.xlu0 %645
    %v648 = vmul.f32 %v646, %v457
    %v649 = vadd.f32 %v629, %v648
    %v650 = vmul.f32 %v641, %v282
    %v651 = vmul.f32 %v641, %v283
    %v654 = vrot.slane %v650, 7
    %v655 = vrot.slane %v651, 7
    %v658 = vadd.f32 %v638, %v654
    %v659 = vadd.f32 %v639, %v655
    %v660 = vlaneseq
    %v661 = vshrl.u32 %v660, 7
    %v662 = vsub.s32 0, %v661
    %v663 = vrot.slane %v658, %v662
    %v664 = vlaneseq
    %v665 = vshrl.u32 %v664, 7
    %v666 = vsub.s32 0, %v665
    %v667 = vrot.slane %v659, %v666
    %670 = vset.pattern.permute.xlu0 0
    %671 = vperm.xlu0 %670, %v663
    %v672 = vpop.permute.xlu0 %671
    %673 = vset.pattern.permute.xlu0 0
    %674 = vperm.xlu0 %673, %v667
    %v675 = vpop.permute.xlu0 %674
    %v676 = vsel %vm86, %v675, %v672
    %v678 = vadd.f32 %v649, %v676
    %v679 = vmul.f32 %v678, %v494
    %v680 = vld [vmem:[%s4 + $0x1] sm:$0x1]
    %v682 = vlaneseq
    %v683 = vshrl.u32 %v682, 7
    %v684 = vsub.s32 0, %v683
    %v685 = vrot.slane %v680, %v684
    %v687 = vadd.f32 %v679, %v685
    %688 = vst [vmem:[#allocation7 + $0x2] sm:$0x3] %v687
    // Predicated region
    $region34: #{tpu_custom_call.1} parent=1 // pred_check
      _
    $region35: #{tpu_custom_call.1} parent=1 // pred_check_branch
      %690 = sbr.rel (0) target = $region37
    $region36: #{tpu_custom_call.1} parent=1 // pred_region
      %s692 = ssub.s32 64, 64
      %693 = vsyncadd [#allocation4], %s692
      %s695 = sshll.u32 [#allocation7], 4
      %s696 = int_to_ptr.vmem [resolvable:$true] %s695
      %698 = dma.vmem_to_hbm [thread:$0]  %s696, 64, %s6, [#allocation4]
    $region37: #{tpu_custom_call.1} parent=1 // pred_fallthru
      _
    // Predicated region
    $region38: #{tpu_custom_call.1} parent=1 // pred_check
      _
    $region39: #{tpu_custom_call.1} parent=1 // pred_check_branch
      %700 = sbr.rel (0) target = $region41
    $region40: #{tpu_custom_call.1} parent=1 // pred_region
      %701 = dma.done [#allocation4], 64
    $region41: #{tpu_custom_call.1} parent=1 // pred_fallthru
      _
    %702 = vsyncpa [#allocation3], 1
    %703 = vsyncpa [#allocation4], 1
    %704 = vsyncpa [#allocation5], 1

</llo_original>
